<compile_context>
chip_gen: v5e
topology: v5e:2x2
jax: 0.10.0
libtpu: 0.0.40
codegen_flags: <defaults>
</compile_context>

<pallas_src>
import math

import jax
import jax.numpy as jnp
from jax.experimental import pallas as pl
from jax.experimental.pallas import tpu as pltpu


def _sublane_multiple(dtype) -> int:
    # f32 -> 8, bf16 -> 16, int8/fp8 -> 32 (sub-32-bit dtypes pack along sublanes).
    return max(8, 32 // jnp.dtype(dtype).itemsize)


def _vmem_capacity_bytes() -> int:
    try:
        cap = getattr(pltpu.get_tpu_info(), "vmem_capacity_bytes", None)
        if cap:
            return int(cap)
    except Exception:
        pass
    return 64 << 20  # conservative: v7x per-TensorCore VMEM


def _copy_tile_kernel(src_ref, out_ref):
    # Pure streaming copy of the current tile; the row slice is realized by the
    # index_maps / output extent (tail rows are masked by Pallas).
    out_ref[...] = src_ref[...]


def _copy_head_kernel(src_ref, out_ref):
    # Degenerate path: whole source table resident in VMEM; statically slice
    # the head rows into the output block.
    r = out_ref.shape[0]
    out_ref[...] = src_ref[:r, :]


def _copy_head_rows(src2d: jax.Array, num_rows: int) -> jax.Array:
    """Return src2d[:num_rows, :] via a Pallas streaming-copy kernel."""
    total_rows, cols = src2d.shape
    dtype = src2d.dtype
    itemsize = jnp.dtype(dtype).itemsize
    sub = _sublane_multiple(dtype)
    row_bytes = cols * itemsize

    cost = pl.CostEstimate(
        flops=0, transcendentals=0, bytes_accessed=2 * num_rows * row_bytes
    )

    # Small-table / short-table path: one full-extent block each way.
    if total_rows < sub or total_rows * row_bytes <= (2 << 20):
        return pl.pallas_call(
            _copy_head_kernel,
            out_shape=jax.ShapeDtypeStruct((num_rows, cols), dtype),
            grid_spec=pltpu.PrefetchScalarGridSpec(
                num_scalar_prefetch=0,
                grid=(1,),
                in_specs=[pl.BlockSpec((total_rows, cols), lambda i: (0, 0))],
                out_specs=pl.BlockSpec((num_rows, cols), lambda i: (0, 0)),
            ),
            compiler_params=pltpu.CompilerParams(
                dimension_semantics=("arbitrary",),
                vmem_limit_bytes=32 << 20,
            ),
            cost_estimate=cost,
        )(src2d)

    # Tiled streaming copy: largest dtype-aligned row tile that keeps the
    # double-buffered (input + output) pipeline inside a VMEM budget that is
    # safe on every generation (v7x has only 64 MiB physical VMEM per TC).
    vmem_cap = _vmem_capacity_bytes()
    per_buf_cap = min(8 << 20, vmem_cap // 16)      # per pipeline buffer
    tile = max(sub, per_buf_cap // row_bytes)       # rows/tile from VMEM budget
    tile = max(sub, (tile // sub) * sub)            # dtype sublane alignment
    tile = min(tile, (total_rows // sub) * sub)     # never exceeds the source

    grid = (pl.cdiv(num_rows, tile),)               # partial tail block is masked

    needed = 4 * tile * row_bytes                   # 2 in-bufs + 2 out-bufs
    vmem_limit = int(min(max(needed + (8 << 20), 16 << 20), (vmem_cap * 3) // 4))

    return pl.pallas_call(
        _copy_tile_kernel,
        out_shape=jax.ShapeDtypeStruct((num_rows, cols), dtype),
        grid_spec=pltpu.PrefetchScalarGridSpec(
            num_scalar_prefetch=0,
            grid=grid,
            in_specs=[pl.BlockSpec((tile, cols), lambda i: (i, 0))],
            out_specs=pl.BlockSpec((tile, cols), lambda i: (i, 0)),
        ),
        compiler_params=pltpu.CompilerParams(
            dimension_semantics=("parallel",),
            vmem_limit_bytes=vmem_limit,
        ),
        cost_estimate=cost,
    )(src2d)


def random_positional_embedding(embedding: jax.Array, seq_len: int) -> jax.Array:
    """forward(x) == embedding[:seq_len, :] (seq_len = x.shape[1], static)."""
    max_length, d_model = embedding.shape
    if not isinstance(seq_len, int):
        raise TypeError("seq_len must be a static Python int (it is x.shape[1]).")
    assert 1 <= seq_len <= max_length

    n_copy = seq_len * d_model
    n_total = max_length * d_model
    if n_copy % 128 == 0 and n_total % 128 == 0:
        # Lane-dense path: the head-rows slice is contiguous in row-major
        # memory, so view the table as (-1, 128) and copy full-width rows
        # (avoids masked partial-width stores when d_model is not a lane
        # multiple).  The reshapes are layout-preserving bitcasts.
        flat = embedding.reshape(n_total // 128, 128)
        out = _copy_head_rows(flat, n_copy // 128)
        return out.reshape(seq_len, d_model)

    # Fallback: copy (seq_len, d_model) rows directly (lane-masked stores if
    # d_model is not a multiple of 128).
    return _copy_head_rows(embedding, seq_len)


def make_embedding(key, max_length: int, d_model: int, dtype=jnp.float32):
    """Xavier-uniform init matching nn.init.xavier_uniform_ for a
    (max_length, d_model) parameter (distributionally, not bit-exact)."""
    bound = math.sqrt(6.0 / (max_length + d_model))
    return jax.random.uniform(
        key, (max_length, d_model), dtype=dtype, minval=-bound, maxval=bound
    )


if __name__ == "__main__":
    key = jax.random.PRNGKey(0)
    k_emb, k_x = jax.random.split(key)

    d_model = 32
    max_length = 16
    batch, seq = 2, 8

    embedding = make_embedding(k_emb, max_length, d_model)
    x = jax.random.normal(k_x, (batch, seq, d_model), dtype=jnp.float32)

    seq_len = x.shape[1]  # forward only uses the (static) seq dimension of x
    out = random_positional_embedding(embedding, seq_len)
    out = jax.block_until_ready(out)

    # Reference check against plain slicing.
    ref = embedding[:seq_len, :]
    assert out.shape == (seq_len, d_model)
    assert out.dtype == embedding.dtype
    assert jnp.allclose(out, ref), "mismatch vs reference slice"

    print("KERNEL_OK")
</pallas_src>

<mosaic_0001>
module attributes {stable_mosaic.version = 11 : i64} {
  func.func @_copy_head_kernel(%arg0: i32, %arg1: memref<4x128xf32, #tpu.memory_space<vmem>>, %arg2: memref<2x128xf32, #tpu.memory_space<vmem>>) attributes {dimension_semantics = [#tpu.dimension_semantics<arbitrary>], iteration_bounds = array<i64: 1>, scalar_prefetch = 0 : i64, scratch_operands = 0 : i64, tpu.core_type = #tpu.core_type<tc>, window_params = [{pipeline_mode = #tpu.pipeline_mode<synchronous>, transform_indices = @transform_0, window_bounds = array<i64: 4, 128>}, {pipeline_mode = #tpu.pipeline_mode<synchronous>, transform_indices = @transform_1, window_bounds = array<i64: 2, 128>}]} {
    %c0 = arith.constant 0 : index
    %c0_0 = arith.constant 0 : index
    %0 = vector.load %arg1[%c0, %c0_0] : memref<4x128xf32, #tpu.memory_space<vmem>>, vector<2x128xf32>
    %c0_1 = arith.constant 0 : index
    %c0_2 = arith.constant 0 : index
    %1 = vector.load %arg2[%c0_1, %c0_2] : memref<2x128xf32, #tpu.memory_space<vmem>>, vector<2x128xf32>
    tpu.vector_store %arg2[%c0_1, %c0_2], %0 {strides = array<i32>} : memref<2x128xf32, #tpu.memory_space<vmem>>, vector<2x128xf32>,
    return
  }
  func.func @transform_0(%arg0: i32) -> (i32, i32) {
    %c0_i32 = arith.constant 0 : i32
    %c0_i32_0 = arith.constant 0 : i32
    %c0_i32_1 = arith.constant 0 : i32
    return %c0_i32, %c0_i32_0 : i32, i32
  }
  func.func @transform_1(%arg0: i32) -> (i32, i32) {
    %c0_i32 = arith.constant 0 : i32
    %c0_i32_0 = arith.constant 0 : i32
    %c0_i32_1 = arith.constant 0 : i32
    return %c0_i32, %c0_i32_0 : i32, i32
  }
}

</mosaic_0001>

<llo_original>
// kernel: tpu_custom_call.1
$region0: #{tpu_custom_call.1}
  #allocation0 [shape = 'u32[]', space=smem, size = 0x4, offset = 0x4, fixed_abs, tag = 'smem constant byte address 0x4 - core index']
  #allocation1 [shape = 'u32[72,128]{1,0:T(1,128)}', space=vmem, size = 0x9000, scoped, tag = 'internal scratch']
  %s0 = inlined_call_operand.hbm [shape: f32[4,128], index: 0, kind: input, shape index: {}]
  %s1 = inlined_call_operand.hbm [shape: f32[2,128], index: 1, kind: output, shape index: {}]
  %s2 = sld [smem:[#allocation0]]
  $region18: #{tpu_custom_call.1} parent=0
    _
  %s4 = ssub.s32 1, %s2
  %s5 = scalar_select 0, %s4, %s2
  $region1: #{tpu_custom_call.1} parent=0
    #allocation2 [shape = 'u8[2048]{0}', space=vmem, size = 0x800, scoped, tag = 'input window, operand 0, single buffered']
    #allocation3 [shape = 's32[1]{0}', space=sflag, size = 0x4, scoped, tag = 'scoped memory for tpu_custom_call.1']
    #allocation4 [shape = 's32[1]{0}', space=sflag, size = 0x4, scoped, tag = 'scoped memory for tpu_custom_call.1']
    #allocation5 [shape = 'u8[1024]{0}', space=vmem, size = 0x400, scoped, tag = 'output window, operand 0, single buffered']
    %6 = vsyncpa [#allocation3], 0
    %7 = vsyncpa [#allocation4], 0
    // Predicated region
    $region2: #{tpu_custom_call.1} parent=1 // pred_check
      _
    $region3: #{tpu_custom_call.1} parent=1 // pred_check_branch
      %9 = sbr.rel (0) target = $region5
    $region4: #{tpu_custom_call.1} parent=1 // pred_region
      %11 = vsyncadd [#allocation3], 0
      %s13 = sshll.u32 %s0, 4
      %s14 = int_to_ptr.hbm [resolvable:$true] %s13
      %s15 = sshll.u32 [#allocation2], 4
      %s16 = int_to_ptr.vmem [resolvable:$true] %s15
      %18 = dma.hbm_to_vmem [thread:$0]  %s14, 64, %s16, [#allocation3]
    $region5: #{tpu_custom_call.1} parent=1 // pred_fallthru
      _
    // Predicated region
    $region6: #{tpu_custom_call.1} parent=1 // pred_check
      _
    $region7: #{tpu_custom_call.1} parent=1 // pred_check_branch
      %20 = sbr.rel (0) target = $region9
    $region8: #{tpu_custom_call.1} parent=1 // pred_region
      %22 = dma.done [#allocation3], 64
    $region9: #{tpu_custom_call.1} parent=1 // pred_fallthru
      _
    %v23 = vld [vmem:[#allocation2] sm:$0x3]
    %24 = vst [vmem:[#allocation5] sm:$0x3] %v23
    // Predicated region
    $region10: #{tpu_custom_call.1} parent=1 // pred_check
      _
    $region11: #{tpu_custom_call.1} parent=1 // pred_check_branch
      %26 = sbr.rel (0) target = $region13
    $region12: #{tpu_custom_call.1} parent=1 // pred_region
      %28 = vsyncadd [#allocation4], 0
      %s30 = sshll.u32 [#allocation5], 4
      %s31 = int_to_ptr.vmem [resolvable:$true] %s30
      %s32 = sshll.u32 %s1, 4
      %s33 = int_to_ptr.hbm [resolvable:$true] %s32
      %35 = dma.vmem_to_hbm [thread:$0]  %s31, 32, %s33, [#allocation4]
    $region13: #{tpu_custom_call.1} parent=1 // pred_fallthru
      _
    // Predicated region
    $region14: #{tpu_custom_call.1} parent=1 // pred_check
      _
    $region15: #{tpu_custom_call.1} parent=1 // pred_check_branch
      %37 = sbr.rel (0) target = $region17
    $region16: #{tpu_custom_call.1} parent=1 // pred_region
      %39 = dma.done [#allocation4], 32
    $region17: #{tpu_custom_call.1} parent=1 // pred_fallthru
      _
    %40 = vsyncpa [#allocation3], 1
    %41 = vsyncpa [#allocation4], 1

</llo_original>
